<compile_context>
chip_gen: v7x
topology: tpu7x:2x2x1
jax: 0.10.0
libtpu: 0.0.40
codegen_flags: <defaults>
</compile_context>

<pallas_src>
from typing import Optional

import jax
import jax.numpy as jnp
from jax.experimental import pallas as pl
from jax.experimental.pallas import tpu as pltpu


# --------------------------------------------------------------------------
# glue: 1-D shift interpolation weight matrices (F.grid_sample semantics)
# --------------------------------------------------------------------------
def _reflect_coords(s: jnp.ndarray, n: int, align_corners: bool) -> jnp.ndarray:
    """PyTorch grid_sample 'reflection' coordinate folding along one axis."""
    if n <= 1:
        return jnp.zeros_like(s)
    if align_corners:
        low, span = 0.0, float(n - 1)
    else:
        low, span = -0.5, float(n)
    a = jnp.abs(s - low)
    extra = jnp.mod(a, span)
    flips = jnp.floor(a / span)
    even = jnp.mod(flips, 2.0) == 0.0
    return jnp.where(even, extra + low, span - extra + low)


def _axis_shift_matrix(n: int, shift: jnp.ndarray, mode: str, padding_mode: str,
                       align_corners: bool) -> jnp.ndarray:
    """(B, n, n) f32 matrix M with out = M @ src along one axis.

    Output index o samples the source at coordinate s = o - shift (pixel units)
    with grid_sample-style interpolation / padding.
    """
    shift = shift.astype(jnp.float32)
    o = jnp.arange(n, dtype=jnp.float32)
    s = o[None, :] - shift[:, None]                                   # (B, n)

    if padding_mode == "border":
        s = jnp.clip(s, 0.0, float(n - 1))
    elif padding_mode == "reflection":
        s = jnp.clip(_reflect_coords(s, n, align_corners), 0.0, float(n - 1))
    elif padding_mode != "zeros":
        raise NotImplementedError(f"padding_mode '{padding_mode}' not supported")

    if mode == "nearest":
        idx = jnp.round(s).astype(jnp.int32)              # round-half-even == nearbyint
        return jax.nn.one_hot(idx, n, dtype=jnp.float32)  # OOB index -> zero row
    if mode == "bilinear":
        i0f = jnp.floor(s)
        w1 = s - i0f
        w0 = 1.0 - w1
        i0 = i0f.astype(jnp.int32)
        i1 = i0 + 1
        # one_hot of an out-of-range index is the zero row -> 'zeros' padding for free
        return (jax.nn.one_hot(i0, n, dtype=jnp.float32) * w0[..., None]
                + jax.nn.one_hot(i1, n, dtype=jnp.float32) * w1[..., None])
    raise NotImplementedError(f"mode '{mode}' not supported")


# --------------------------------------------------------------------------
# Pallas kernel: separable translation warp as two channel-folded matmuls
# --------------------------------------------------------------------------
def _translate_kernel(wht_ref, wwt_ref, x_ref, o_ref):
    # wht_ref: (H, H)      transposed row-interp weights  (Wh^T) for this batch
    # wwt_ref: (W, W)      transposed column-interp weights (Ww^T)
    # x_ref:   (tc, H, W)  channel block
    # o_ref:   (tc, H, W)
    tc, h, w = x_ref.shape
    cdt = wht_ref.dtype
    x = x_ref[...].astype(cdt)

    # column pass: fold channels*rows into the matmul M dimension
    t = jnp.dot(x.reshape(tc * h, w), wwt_ref[...],
                preferred_element_type=jnp.float32)                    # (tc*h, w) f32

    # row pass: batched minor-dim transpose (XLU), then ONE channel-folded matmul
    # against Wh^T, then transpose back.  r[c] = (Wh @ t[c])^T.
    # NOTE: the reshapes/transposes are free relayouts only when H, W are
    # sublane-aligned (multiples of 8); otherwise Mosaic inserts relayout copies.
    tt = jnp.swapaxes(t.reshape(tc, h, w), 1, 2).astype(cdt)           # (tc, w, h)
    r = jnp.dot(tt.reshape(tc * w, h), wht_ref[...],
                preferred_element_type=jnp.float32)                    # (tc*w, h) f32
    o_ref[...] = jnp.swapaxes(r.reshape(tc, w, h), 1, 2).astype(o_ref.dtype)


# --------------------------------------------------------------------------
# planning: channel block size + VMEM limit (generation-aware)
# --------------------------------------------------------------------------
def _vmem_ceiling_bytes() -> int:
    try:
        phys = int(pltpu.get_tpu_info().vmem_capacity_bytes)
    except Exception:
        phys = 64 << 20          # conservative fallback (v7x-sized)
    # leave headroom for compiler-internal scratch; ~54 MiB on v7x, 100 MiB on v5e/v6e
    return int(min(int(phys * 0.85), 100 << 20))


def _plan_blocks(c: int, h: int, w: int, x_itemsize: int, w_itemsize: int,
                 single_buffer_weights: bool):
    ceiling = _vmem_ceiling_bytes()
    n_wbuf = 1 if single_buffer_weights else 2
    weight_bytes = n_wbuf * (h * h + w * w) * w_itemsize
    # live bytes per channel per grid step:
    #   double-buffered (in + out) blocks  +  f32 column-pass result t
    #   +  compute-dtype transposed copy   +  f32 row-pass result r
    per_chan = (2 * 2 * h * w * x_itemsize) + h * w * (4 + w_itemsize + 4)
    budget = ceiling - weight_bytes - (6 << 20)
    tc = int(max(1, min(c, budget // per_chan if budget > 0 else 1)))
    need = weight_bytes + tc * per_chan + (6 << 20)
    vmem_limit = int(min(max(need, 32 << 20), ceiling))
    return tc, vmem_limit


def _translate_call(x: jnp.ndarray, wht: jnp.ndarray, wwt: jnp.ndarray,
                    *, single_buffer_weights: bool) -> jnp.ndarray:
    b, c, h, w = x.shape
    elt = x.dtype.itemsize
    welt = wht.dtype.itemsize
    tc, vmem_limit = _plan_blocks(c, h, w, elt, welt, single_buffer_weights)
    n_cb = pl.cdiv(c, tc)        # ragged last channel block handled by Pallas masking

    wkw = {"pipeline_mode": pl.Buffered(1)} if single_buffer_weights else {}

    flops = 2.0 * b * c * h * w * (h + w)
    bytes_accessed = 2.0 * b * c * h * w * elt + b * (h * h + w * w) * welt

    return pl.pallas_call(
        _translate_kernel,
        out_shape=jax.ShapeDtypeStruct((b, c, h, w), x.dtype),
        grid_spec=pltpu.PrefetchScalarGridSpec(
            num_scalar_prefetch=0,
            grid=(b, n_cb),          # channel blocks innermost -> weights stay resident
            in_specs=[
                pl.BlockSpec((pl.Squeezed(), h, h), lambda bi, ci: (bi, 0, 0), **wkw),
                pl.BlockSpec((pl.Squeezed(), w, w), lambda bi, ci: (bi, 0, 0), **wkw),
                pl.BlockSpec((pl.Squeezed(), tc, h, w), lambda bi, ci: (bi, ci, 0, 0)),
            ],
            out_specs=pl.BlockSpec((pl.Squeezed(), tc, h, w), lambda bi, ci: (bi, ci, 0, 0)),
        ),
        compiler_params=pltpu.CompilerParams(
            dimension_semantics=("parallel", "parallel"),
            vmem_limit_bytes=vmem_limit,
        ),
        cost_estimate=pl.CostEstimate(
            flops=int(flops), transcendentals=0, bytes_accessed=int(bytes_accessed)),
    )(wht, wwt, x)


def _translate_pallas(x: jnp.ndarray, wht: jnp.ndarray, wwt: jnp.ndarray) -> jnp.ndarray:
    _, _, h, w = x.shape
    welt = wht.dtype.itemsize
    # Single-buffer the weights only when double-buffering them actually costs
    # meaningful VMEM (they change only on the outer batch axis).
    want_single_buf = 2 * (h * h + w * w) * welt > (2 << 20)
    if want_single_buf:
        try:
            return _translate_call(x, wht, wwt, single_buffer_weights=True)
        except Exception:
            pass   # pipeline_mode single-buffering unavailable -> plain build below
    return _translate_call(x, wht, wwt, single_buffer_weights=False)


# --------------------------------------------------------------------------
# Module equivalent
# --------------------------------------------------------------------------
class Translate:
    """JAX/Pallas port of kornia Translate. Input: (C, H, W) or (B, C, H, W).

    use_bf16_matmul: None  -> bf16 MXU operands only for bf16 inputs (default),
                     True  -> force bf16 MXU operands (f32 accumulation) — opt-in
                              for compute-bound large f32 frames,
                     False -> force f32 MXU operands.
    """

    def __init__(self, translation, mode: str = "bilinear",
                 padding_mode: str = "zeros", align_corners: bool = True,
                 use_bf16_matmul: Optional[bool] = None) -> None:
        self.translation = jnp.asarray(translation, dtype=jnp.float32)
        if self.translation.ndim != 2 or self.translation.shape[-1] != 2:
            raise ValueError(f"translation must have shape (B, 2). Got {self.translation.shape}")
        if mode not in ("bilinear", "nearest"):
            raise NotImplementedError(f"mode '{mode}' not supported")
        if padding_mode not in ("zeros", "border", "reflection"):
            raise NotImplementedError(f"padding_mode '{padding_mode}' not supported")
        self.mode = mode
        self.padding_mode = padding_mode
        self.align_corners = bool(align_corners)
        self.use_bf16_matmul = use_bf16_matmul

    def __call__(self, x: jnp.ndarray) -> jnp.ndarray:
        if x.ndim not in (3, 4):
            raise ValueError(f"Invalid tensor shape, we expect CxHxW or BxCxHxW. Got: {x.shape}")
        unbatched = x.ndim == 3
        if unbatched:
            x = x[None]
        b, c, h, w = x.shape

        trans = self.translation
        if trans.shape[0] == 1 and b > 1:
            trans = jnp.broadcast_to(trans, (b, 2))
        elif trans.shape[0] != b:
            raise ValueError(
                f"translation batch ({trans.shape[0]}) must be 1 or match input batch ({b})")

        dx = trans[:, 0]
        dy = trans[:, 1]
        # kornia's warp_affine normalizes with the align_corners=True pixel->[-1,1]
        # transform but samples with the user's align_corners flag, which scales the
        # effective pixel shift by n/(n-1) when align_corners=False.
        # TODO(synk): cross-check the align_corners=False rescaling against
        # torch warp_affine+grid_sample for even/odd sizes (self-test covers True only).
        if self.align_corners:
            sx, sy = dx, dy
        else:
            sx = dx * (w / (w - 1) if w > 1 else 1.0)
            sy = dy * (h / (h - 1) if h > 1 else 1.0)

        wh = _axis_shift_matrix(h, sy, self.mode, self.padding_mode, self.align_corners)  # (B,H,H)
        ww = _axis_shift_matrix(w, sx, self.mode, self.padding_mode, self.align_corners)  # (B,W,W)
        wht = jnp.swapaxes(wh, -1, -2)                                                    # Wh^T
        wwt = jnp.swapaxes(ww, -1, -2)                                                    # Ww^T

        # MXU operand dtype: bf16 inputs keep bf16 operands (f32 accumulation);
        # f32 inputs stay f32 unless the bf16 path is explicitly requested.
        if self.use_bf16_matmul is None:
            use_bf16 = (x.dtype == jnp.bfloat16)
        else:
            use_bf16 = bool(self.use_bf16_matmul)
        compute_dtype = jnp.bfloat16 if use_bf16 else jnp.float32
        wht = wht.astype(compute_dtype)
        wwt = wwt.astype(compute_dtype)

        out = _translate_pallas(x, wht, wwt)
        if unbatched:
            out = out[0]
        return out


def translate(tensor: jnp.ndarray, translation, mode: str = "bilinear",
              padding_mode: str = "zeros", align_corners: bool = True,
              use_bf16_matmul: Optional[bool] = None) -> jnp.ndarray:
    return Translate(translation, mode, padding_mode, align_corners, use_bf16_matmul)(tensor)


# --------------------------------------------------------------------------
# main
# --------------------------------------------------------------------------
if __name__ == "__main__":
    key = jax.random.PRNGKey(0)
    x = jax.random.uniform(key, (2, 4, 16, 16), dtype=jnp.float32)   # NCHW
    translation = jnp.array([[1.0, 0.0],        # integer shift: 1 px right
                             [2.5, -1.25]],     # fractional shift: exercises bilinear
                            dtype=jnp.float32)

    out = Translate(translation)(x)             # bilinear, zeros, align_corners=True
    out = jax.block_until_ready(out)

    assert out.shape == x.shape, out.shape
    assert out.dtype == x.dtype
    # integer translation (dx=1, dy=0) must be an exact 1-px right shift with zero fill
    assert jnp.allclose(out[0, :, :, 1:], x[0, :, :, :-1], atol=1e-5)
    assert jnp.allclose(out[0, :, :, 0], 0.0, atol=1e-5)

    # independent bilinear reference for the fractional shift (batch 1):
    # out(y, x) samples input at (y - dy, x - dx) with zero padding.
    yy, xx = jnp.meshgrid(jnp.arange(16, dtype=jnp.float32),
                          jnp.arange(16, dtype=jnp.float32), indexing="ij")
    coords = [yy - (-1.25), xx - 2.5]
    ref1 = jax.vmap(
        lambda img: jax.scipy.ndimage.map_coordinates(img, coords, order=1,
                                                      mode="constant", cval=0.0)
    )(x[1])
    assert jnp.allclose(out[1], ref1, atol=1e-4, rtol=1e-4)

    assert bool(jnp.all(jnp.isfinite(out)))
    print("KERNEL_OK")
</pallas_src>

<mosaic_0001>
module attributes {stable_mosaic.version = 11 : i64} {
  func.func @_translate_kernel(%arg0: i32, %arg1: i32, %arg2: memref<1x16x16xf32, #tpu.memory_space<vmem>>, %arg3: memref<1x16x16xf32, #tpu.memory_space<vmem>>, %arg4: memref<1x4x16x16xf32, #tpu.memory_space<vmem>>, %arg5: memref<1x4x16x16xf32, #tpu.memory_space<vmem>>) attributes {dimension_semantics = [#tpu.dimension_semantics<parallel>, #tpu.dimension_semantics<parallel>], iteration_bounds = array<i64: 2, 1>, scalar_prefetch = 0 : i64, scratch_operands = 0 : i64, tpu.core_type = #tpu.core_type<tc>, window_params = [{transform_indices = @transform_0, window_bounds = array<i64: 1, 16, 16>}, {transform_indices = @transform_1, window_bounds = array<i64: 1, 16, 16>}, {transform_indices = @transform_2, window_bounds = array<i64: 1, 4, 16, 16>}, {transform_indices = @transform_3, window_bounds = array<i64: 1, 4, 16, 16>}]} {
    %c0 = arith.constant 0 : index
    %c0_0 = arith.constant 0 : index
    %c0_1 = arith.constant 0 : index
    %c0_2 = arith.constant 0 : index
    %0 = vector.load %arg4[%c0, %c0_0, %c0_1, %c0_2] : memref<1x4x16x16xf32, #tpu.memory_space<vmem>>, vector<1x4x16x16xf32>
    %1 = vector.shape_cast %0 : vector<1x4x16x16xf32> to vector<4x16x16xf32>
    %2 = vector.shape_cast %1 : vector<4x16x16xf32> to vector<64x16xf32>
    %c0_3 = arith.constant 0 : index
    %c0_4 = arith.constant 0 : index
    %c0_5 = arith.constant 0 : index
    %3 = vector.load %arg3[%c0_3, %c0_4, %c0_5] : memref<1x16x16xf32, #tpu.memory_space<vmem>>, vector<1x16x16xf32>
    %4 = vector.shape_cast %3 : vector<1x16x16xf32> to vector<16x16xf32>
    %cst = arith.constant dense<0.000000e+00> : vector<64x16xf32>
    %5 = tpu.matmul %2, %4, %cst {dimension_numbers = #tpu.dot_dimension_numbers<[1], [0], [0], [1], [0, 0, 1, 1], [], []>} : vector<64x16xf32>, vector<16x16xf32>, vector<64x16xf32> -> vector<64x16xf32>
    %6 = vector.shape_cast %5 : vector<64x16xf32> to vector<4x16x16xf32>
    %7 = tpu.transpose %6, [0, 2, 1] : vector<4x16x16xf32> -> vector<4x16x16xf32>
    %8 = vector.shape_cast %7 : vector<4x16x16xf32> to vector<64x16xf32>
    %c0_6 = arith.constant 0 : index
    %c0_7 = arith.constant 0 : index
    %c0_8 = arith.constant 0 : index
    %9 = vector.load %arg2[%c0_6, %c0_7, %c0_8] : memref<1x16x16xf32, #tpu.memory_space<vmem>>, vector<1x16x16xf32>
    %10 = vector.shape_cast %9 : vector<1x16x16xf32> to vector<16x16xf32>
    %cst_9 = arith.constant dense<0.000000e+00> : vector<64x16xf32>
    %11 = tpu.matmul %8, %10, %cst_9 {dimension_numbers = #tpu.dot_dimension_numbers<[1], [0], [0], [1], [0, 0, 1, 1], [], []>} : vector<64x16xf32>, vector<16x16xf32>, vector<64x16xf32> -> vector<64x16xf32>
    %12 = vector.shape_cast %11 : vector<64x16xf32> to vector<4x16x16xf32>
    %13 = tpu.transpose %12, [0, 2, 1] : vector<4x16x16xf32> -> vector<4x16x16xf32>
    %c0_10 = arith.constant 0 : index
    %c0_11 = arith.constant 0 : index
    %c0_12 = arith.constant 0 : index
    %c0_13 = arith.constant 0 : index
    %14 = vector.load %arg5[%c0_10, %c0_11, %c0_12, %c0_13] : memref<1x4x16x16xf32, #tpu.memory_space<vmem>>, vector<1x4x16x16xf32>
    %15 = vector.shape_cast %14 : vector<1x4x16x16xf32> to vector<4x16x16xf32>
    %16 = vector.shape_cast %13 : vector<4x16x16xf32> to vector<1x4x16x16xf32>
    tpu.vector_store %arg5[%c0_10, %c0_11, %c0_12, %c0_13], %16 {strides = array<i32>} : memref<1x4x16x16xf32, #tpu.memory_space<vmem>>, vector<1x4x16x16xf32>,
    return
  }
  func.func @transform_0(%arg0: i32, %arg1: i32) -> (i32, i32, i32) {
    %c0_i32 = arith.constant 0 : i32
    %c0_i32_0 = arith.constant 0 : i32
    %c0_i32_1 = arith.constant 0 : i32
    return %arg0, %c0_i32, %c0_i32_0 : i32, i32, i32
  }
  func.func @transform_1(%arg0: i32, %arg1: i32) -> (i32, i32, i32) {
    %c0_i32 = arith.constant 0 : i32
    %c0_i32_0 = arith.constant 0 : i32
    %c0_i32_1 = arith.constant 0 : i32
    return %arg0, %c0_i32, %c0_i32_0 : i32, i32, i32
  }
  func.func @transform_2(%arg0: i32, %arg1: i32) -> (i32, i32, i32, i32) {
    %c0_i32 = arith.constant 0 : i32
    %c0_i32_0 = arith.constant 0 : i32
    %c0_i32_1 = arith.constant 0 : i32
    return %arg0, %arg1, %c0_i32, %c0_i32_0 : i32, i32, i32, i32
  }
  func.func @transform_3(%arg0: i32, %arg1: i32) -> (i32, i32, i32, i32) {
    %c0_i32 = arith.constant 0 : i32
    %c0_i32_0 = arith.constant 0 : i32
    %c0_i32_1 = arith.constant 0 : i32
    return %arg0, %arg1, %c0_i32, %c0_i32_0 : i32, i32, i32, i32
  }
}

</mosaic_0001>

<llo_original>
// kernel: tpu_custom_call.1
$region0: #{tpu_custom_call.1}
  #allocation0 [shape = 'u32[]', space=smem, size = 0x4, offset = 0x4, fixed_abs, tag = 'smem constant byte address 0x4 - core index']
  #allocation1 [shape = 'u32[144,128]{1,0:T(1,128)}', space=vmem, size = 0x12000, scoped, tag = 'internal scratch']
  %s0 = inlined_call_operand.hbm [shape: f32[2,16,16], index: 0, kind: input, shape index: {}]
  %s1 = inlined_call_operand.hbm [shape: f32[2,16,16], index: 1, kind: input, shape index: {}]
  %s2 = inlined_call_operand.hbm [shape: f32[2,4,16,16], index: 2, kind: input, shape index: {}]
  %s3 = inlined_call_operand.hbm [shape: f32[2,4,16,16], index: 3, kind: output, shape index: {}]
  %s4 = sld [smem:[#allocation0]]
  $region57: #{tpu_custom_call.1} parent=0
    _
  %s6 = ssub.s32 1, %s4
  %s7 = scalar_select 0, %s6, %s4
  $region1: #{tpu_custom_call.1} parent=0
    #allocation2 [shape = 'u8[16384]{0}', space=vmem, size = 0x4000, scoped, tag = 'input window, operand 0']
    #allocation3 [shape = 's32[2]{0}', space=sflag, size = 0x8, scoped, tag = 'scoped memory for tpu_custom_call.1']
    #allocation4 [shape = 's32[2]{0}', space=sflag, size = 0x8, scoped, tag = 'scoped memory for tpu_custom_call.1']
    #allocation5 [shape = 'u8[16384]{0}', space=vmem, size = 0x4000, scoped, tag = 'input window, operand 1']
    #allocation6 [shape = 's32[2]{0}', space=sflag, size = 0x8, scoped, tag = 'scoped memory for tpu_custom_call.1']
    #allocation7 [shape = 'u8[65536]{0}', space=vmem, size = 0x10000, scoped, tag = 'input window, operand 2']
    #allocation8 [shape = 'u8[65536]{0}', space=vmem, size = 0x10000, scoped, tag = 'output window, operand 0']
    %8 = vsyncpa [#allocation3], 0
    %s9 = scalar_lea.sflag [#allocation3], 1
    %10 = vsyncpa %s9, 0
    %11 = vsyncpa [#allocation6], 0
    %s12 = scalar_lea.sflag [#allocation6], 1
    %13 = vsyncpa %s12, 0
    %14 = vsyncpa [#allocation4], 0
    %s15 = scalar_lea.sflag [#allocation4], 1
    %16 = vsyncpa %s15, 0
    loop: start=0, step=1, limit=4
    $region2: #{tpu_custom_call.1} parent=1 // loop_pre_header
      _
    $region3: #{tpu_custom_call.1} parent=1 // loop_header
      %s18 = sphi 0, %s22
      %p19 = scmp.ge.s32.totalorder %s18, 4
      %s25 = sphi 0, %s37
      %s26 = sphi 0, %s33
      %s27 = sphi 0, %s25
      %s28 = sphi 0, %s26
      %s29 = sphi 0, %s27
      %s30 = sphi 0, %s28
      %s40 = sphi 0, %s42
      %s43 = sphi 0, %s40
      %s44 = sphi 0, %s43
      %s60 = sphi 0, %s44
      %s66 = sphi 0, %s68
      %s69 = sphi 0, %s66
      %s70 = sphi 0, %s69
      %s86 = sphi 0, %s70
      %s94 = sphi 0, %s96
      %s97 = sphi 0, %s94
      %s98 = sphi 0, %s97
      %s114 = sphi 0, %s98
      %s122 = sphi 0, %s124
      %s125 = sphi 0, %s122
      %s126 = sphi 0, %s125
      %s142 = sphi 0, %s126
    $region4: #{tpu_custom_call.1} parent=1 // loop_header_branch
      %21 = sbr.rel (%p19) target = $region8
    $region5: #{tpu_custom_call.1} parent=1 // loop_body
      %s23 = ssub.s32 %s18, 1
      %s24 = ssub.s32 %s18, 2
      %s31 = sadd.s32 1, %s26
      %p32 = scmp.ge.s32.totalorder %s31, 1
      %s33 = scalar_select %p32, 0, %s31
      %s34 = sadd.s32 1, %s25
      %s35 = scalar_select %p32, %s34, %s25
      %p36 = scmp.ge.s32.totalorder %s35, 2
      %s37 = scalar_select %p36, 0, %s35
      %s38 = ssub.s32 %s25, %s37
      %p39 = scmp.eq.s32.totalorder %s38, 0
      %s41 = sadd.s32 %s40, 1
      %s42 = scalar_select %p39, %s40, %s41
      %p45 = pneg %p39
      %p46 = scmp.eq.s32.totalorder %s18, 1
      %p47 = por %p45, %p46
      %p48 = scmp.ne.s32.totalorder %s40, %s43
      %p49 = scmp.eq.s32.totalorder %s18, 0
      %p50 = por %p48, %p49
      %p51 = scmp.ne.s32.totalorder %s40, %s43
      %p52 = scmp.eq.s32.totalorder %s23, 1
      %p53 = por %p51, %p52
      %p54 = scmp.ne.s32.totalorder %s43, %s44
      %p55 = scmp.eq.s32.totalorder %s23, 0
      %p56 = por %p54, %p55
      %p57 = scmp.ne.s32.totalorder %s43, %s44
      %p58 = scmp.eq.s32.totalorder %s24, 1
      %p59 = por %p57, %p58
      %p61 = scmp.ne.s32.totalorder %s44, %s60
      %p62 = scmp.eq.s32.totalorder %s24, 0
      %p63 = por %p61, %p62
      %s64 = ssub.s32 %s25, %s37
      %p65 = scmp.eq.s32.totalorder %s64, 0
      %s67 = sadd.s32 %s66, 1
      %s68 = scalar_select %p65, %s66, %s67
      %p71 = pneg %p65
      %p72 = scmp.eq.s32.totalorder %s18, 1
      %p73 = por %p71, %p72
      %p74 = scmp.ne.s32.totalorder %s66, %s69
      %p75 = scmp.eq.s32.totalorder %s18, 0
      %p76 = por %p74, %p75
      %p77 = scmp.ne.s32.totalorder %s66, %s69
      %p78 = scmp.eq.s32.totalorder %s23, 1
      %p79 = por %p77, %p78
      %p80 = scmp.ne.s32.totalorder %s69, %s70
      %p81 = scmp.eq.s32.totalorder %s23, 0
      %p82 = por %p80, %p81
      %p83 = scmp.ne.s32.totalorder %s69, %s70
      %p84 = scmp.eq.s32.totalorder %s24, 1
      %p85 = por %p83, %p84
      %p87 = scmp.ne.s32.totalorder %s70, %s86
      %p88 = scmp.eq.s32.totalorder %s24, 0
      %p89 = por %p87, %p88
      %s90 = ssub.s32 %s25, %s37
      %s91 = ssub.s32 %s26, %s33
      %s92 = sor.u32 %s90, %s91
      %p93 = scmp.eq.s32.totalorder %s92, 0
      %s95 = sadd.s32 %s94, 1
      %s96 = scalar_select %p93, %s94, %s95
      %p99 = pneg %p93
      %p100 = scmp.eq.s32.totalorder %s18, 1
      %p101 = por %p99, %p100
      %p102 = scmp.ne.s32.totalorder %s94, %s97
      %p103 = scmp.eq.s32.totalorder %s18, 0
      %p104 = por %p102, %p103
      %p105 = scmp.ne.s32.totalorder %s94, %s97
      %p106 = scmp.eq.s32.totalorder %s23, 1
      %p107 = por %p105, %p106
      %p108 = scmp.ne.s32.totalorder %s97, %s98
      %p109 = scmp.eq.s32.totalorder %s23, 0
      %p110 = por %p108, %p109
      %p111 = scmp.ne.s32.totalorder %s97, %s98
      %p112 = scmp.eq.s32.totalorder %s24, 1
      %p113 = por %p111, %p112
      %p115 = scmp.ne.s32.totalorder %s98, %s114
      %p116 = scmp.eq.s32.totalorder %s24, 0
      %p117 = por %p115, %p116
      %s118 = ssub.s32 %s25, %s37
      %s119 = ssub.s32 %s26, %s33
      %s120 = sor.u32 %s118, %s119
      %p121 = scmp.eq.s32.totalorder %s120, 0
      %s123 = sadd.s32 %s122, 1
      %s124 = scalar_select %p121, %s122, %s123
      %p127 = pneg %p121
      %p128 = scmp.eq.s32.totalorder %s18, 1
      %p129 = por %p127, %p128
      %p130 = scmp.ne.s32.totalorder %s122, %s125
      %p131 = scmp.eq.s32.totalorder %s18, 0
      %p132 = por %p130, %p131
      %p133 = scmp.ne.s32.totalorder %s122, %s125
      %p134 = scmp.eq.s32.totalorder %s23, 1
      %p135 = por %p133, %p134
      %p136 = scmp.ne.s32.totalorder %s125, %s126
      %p137 = scmp.eq.s32.totalorder %s23, 0
      %p138 = por %p136, %p137
      %p139 = scmp.ne.s32.totalorder %s125, %s126
      %p140 = scmp.eq.s32.totalorder %s24, 1
      %p141 = por %p139, %p140
      %p143 = scmp.ne.s32.totalorder %s126, %s142
      %p144 = scmp.eq.s32.totalorder %s24, 0
      %p145 = por %p143, %p144
      %p146 = scmp.le.s32.totalorder 1, %s18
      %p147 = scmp.lt.s32.totalorder %s18, 3
      %p148 = pnand %p146, %p147
      %p149 = pneg %p148
      // Predicated region
      $region9: #{tpu_custom_call.1} parent=5 // pred_check
        _
      $region10: #{tpu_custom_call.1} parent=5 // pred_check_branch
        %151 = sbr.rel (%p148) target = $region12
      $region11: #{tpu_custom_call.1} parent=5 // pred_region
        %s152 = ssub.s32 %s18, 1
      $region12: #{tpu_custom_call.1} parent=5 // pred_fallthru
        _
      %p153 = scmp.lt.s32.totalorder %s18, 2
      // Predicated region
      $region13: #{tpu_custom_call.1} parent=5 // pred_check
        %p154 = pneg %p153
      $region14: #{tpu_custom_call.1} parent=5 // pred_check_branch
        %156 = sbr.rel (%p154) target = $region16
      $region15: #{tpu_custom_call.1} parent=5 // pred_region
        // Predicated region
        $region17: #{tpu_custom_call.1} parent=15 // pred_check
          %p157 = pneg %p50
        $region18: #{tpu_custom_call.1} parent=15 // pred_check_branch
          %159 = sbr.rel (%p157) target = $region20
        $region19: #{tpu_custom_call.1} parent=15 // pred_region
          %s160 = sand.u32 %s40, 1
          %s161 = scalar_lea.sflag [#allocation3], %s160
          %s162 = sand.u32 %s40, 1
          %s163 = smul.addr %s162, 16
          %s164 = scalar_lea.vmem [#allocation2], %s163
          %s166 = ssub.s32 256, 256
          %167 = vsyncadd %s161, %s166
          %s168 = smul.addr %s25, 2
          %s169 = smul.addr %s168, 128
          %s170 = scalar_lea.hbm %s0, %s169
          %s171 = sshll.u32 %s164, 4
          %s172 = int_to_ptr.vmem [resolvable:$true] %s171
          %177 = dma.hbm_to_vmem [thread:$0]  %s170, 256, %s172, %s161, 128, 128, 8
        $region20: #{tpu_custom_call.1} parent=15 // pred_fallthru
          _
        // Predicated region
        $region21: #{tpu_custom_call.1} parent=15 // pred_check
          %p178 = pneg %p76
        $region22: #{tpu_custom_call.1} parent=15 // pred_check_branch
          %180 = sbr.rel (%p178) target = $region24
        $region23: #{tpu_custom_call.1} parent=15 // pred_region
          %s181 = sand.u32 %s18, 1
          %s182 = scalar_lea.sflag [#allocation6], %s181
          %s183 = sand.u32 %s66, 1
          %s184 = smul.addr %s183, 16
          %s185 = scalar_lea.vmem [#allocation5], %s184
          %s187 = ssub.s32 256, 256
          %188 = vsyncadd %s182, %s187
          %s189 = smul.addr %s25, 2
          %s190 = smul.addr %s189, 128
          %s191 = scalar_lea.hbm %s1, %s190
          %s192 = sshll.u32 %s185, 4
          %s193 = int_to_ptr.vmem [resolvable:$true] %s192
          %198 = dma.hbm_to_vmem [thread:$0]  %s191, 256, %s193, %s182, 128, 128, 8
        $region24: #{tpu_custom_call.1} parent=15 // pred_fallthru
          _
        // Predicated region
        $region25: #{tpu_custom_call.1} parent=15 // pred_check
          %p199 = pneg %p104
        $region26: #{tpu_custom_call.1} parent=15 // pred_check_branch
          %201 = sbr.rel (%p199) target = $region28
        $region27: #{tpu_custom_call.1} parent=15 // pred_region
          %s202 = sand.u32 %s18, 1
          %s203 = scalar_lea.sflag [#allocation6], %s202
          %s204 = sand.u32 %s94, 1
          %s205 = smul.addr %s204, 64
          %s206 = scalar_lea.vmem [#allocation7], %s205
          %s207 = smul.u32 4, %s26
          %s209 = ssub.s32 1024, 1024
          %210 = vsyncadd %s203, %s209
          %s211 = smul.addr %s207, 2
          %s212 = smul.addr %s25, 8
          %s213 = sadd.s32 %s211, %s212
          %s214 = smul.addr %s213, 128
          %s215 = scalar_lea.hbm %s2, %s214
          %s216 = sshll.u32 %s206, 4
          %s217 = int_to_ptr.vmem [resolvable:$true] %s216
          %222 = dma.hbm_to_vmem [thread:$0]  %s215, 1024, %s217, %s203, 128, 128, 8
        $region28: #{tpu_custom_call.1} parent=15 // pred_fallthru
          _
      $region16: #{tpu_custom_call.1} parent=5 // pred_fallthru
        _
      %p223 = scmp.le.s32.totalorder 1, %s18
      %p224 = scmp.lt.s32.totalorder %s18, 3
      %p225 = pnand %p223, %p224
      %p226 = pneg %p225
      // Predicated region
      $region29: #{tpu_custom_call.1} parent=5 // pred_check
        _
      $region30: #{tpu_custom_call.1} parent=5 // pred_check_branch
        %228 = sbr.rel (%p225) target = $region32
      $region31: #{tpu_custom_call.1} parent=5 // pred_region
        %s229 = ssub.s32 %s18, 1
        %s230 = sand.u32 %s43, 1
        %s231 = scalar_lea.sflag [#allocation3], %s230
        %s232 = sand.u32 %s43, 1
        %s233 = smul.addr %s232, 16
        %s234 = scalar_lea.vmem [#allocation2], %s233
        // Predicated region
        $region33: #{tpu_custom_call.1} parent=31 // pred_check
          %p235 = pneg %p56
        $region34: #{tpu_custom_call.1} parent=31 // pred_check_branch
          %237 = sbr.rel (%p235) target = $region36
        $region35: #{tpu_custom_call.1} parent=31 // pred_region
          %238 = dma.done %s231, 256
        $region36: #{tpu_custom_call.1} parent=31 // pred_fallthru
          _
        %s239 = sand.u32 %s23, 1
        %s240 = scalar_lea.sflag [#allocation6], %s239
        %s241 = sand.u32 %s69, 1
        %s242 = smul.addr %s241, 16
        %s243 = scalar_lea.vmem [#allocation5], %s242
        // Predicated region
        $region37: #{tpu_custom_call.1} parent=31 // pred_check
          %p244 = pneg %p82
        $region38: #{tpu_custom_call.1} parent=31 // pred_check_branch
          %246 = sbr.rel (%p244) target = $region40
        $region39: #{tpu_custom_call.1} parent=31 // pred_region
          %247 = dma.done %s240, 256
        $region40: #{tpu_custom_call.1} parent=31 // pred_fallthru
          _
        %s248 = sand.u32 %s23, 1
        %s249 = scalar_lea.sflag [#allocation6], %s248
        %s250 = sand.u32 %s97, 1
        %s251 = smul.addr %s250, 64
        %s252 = scalar_lea.vmem [#allocation7], %s251
        // Predicated region
        $region41: #{tpu_custom_call.1} parent=31 // pred_check
          %p253 = pneg %p110
        $region42: #{tpu_custom_call.1} parent=31 // pred_check_branch
          %255 = sbr.rel (%p253) target = $region44
        $region43: #{tpu_custom_call.1} parent=31 // pred_region
          %256 = dma.done %s249, 1024
        $region44: #{tpu_custom_call.1} parent=31 // pred_fallthru
          _
        %s257 = sand.u32 %s43, 1
        %s258 = scalar_lea.sflag [#allocation3], %s257
        %s259 = sand.u32 %s43, 1
        %s260 = smul.addr %s259, 16
        %s261 = scalar_lea.vmem [#allocation2], %s260
        %p262 = pneg %p56
        %p263 = pneg %p53
        %s264 = sand.u32 %s23, 1
        %s265 = scalar_lea.sflag [#allocation6], %s264
        %s266 = sand.u32 %s69, 1
        %s267 = smul.addr %s266, 16
        %s268 = scalar_lea.vmem [#allocation5], %s267
        %p269 = pneg %p82
        %p270 = pneg %p79
        %s271 = sand.u32 %s23, 1
        %s272 = scalar_lea.sflag [#allocation6], %s271
        %s273 = sand.u32 %s97, 1
        %s274 = smul.addr %s273, 64
        %s275 = scalar_lea.vmem [#allocation7], %s274
        %p276 = pneg %p110
        %p277 = pneg %p107
        %p278 = pneg %p138
        %p279 = pneg %p135
        %s280 = sand.u32 %s125, 1
        %s281 = scalar_lea.sflag [#allocation4], %s280
        %s282 = sand.u32 %s125, 1
        %s283 = smul.addr %s282, 64
        %s284 = scalar_lea.vmem [#allocation8], %s283
        %s285 = smul.u32 4, %s28
        %s286 = smul.u32 4, %s28
        %v287 = vld [vmem:[%s252] sm:$0xff]
        %v288 = vld [vmem:[%s252 + $0x8] sm:$0xff]
        %v289 = vld [vmem:[%s252 + $0x10] sm:$0xff]
        %v290 = vld [vmem:[%s252 + $0x18] sm:$0xff]
        %v291 = vld [vmem:[%s252 + $0x20] sm:$0xff]
        %v292 = vld [vmem:[%s252 + $0x28] sm:$0xff]
        %v293 = vld [vmem:[%s252 + $0x30] sm:$0xff]
        %v294 = vld [vmem:[%s252 + $0x38] sm:$0xff]
        %v295 = vld [vmem:[%s243] sm:$0xff]
        %v296 = vld [vmem:[%s243 + $0x8] sm:$0xff]
        %vm297 = vcmask 130048
        %v299 = vsel %vm297, %v287, 0
        %v302 = vsel %vm297, %v288, 0
        %v305 = vsel %vm297, %v289, 0
        %v308 = vsel %vm297, %v290, 0
        %v311 = vsel %vm297, %v291, 0
        %v314 = vsel %vm297, %v292, 0
        %v317 = vsel %vm297, %v293, 0
        %v320 = vsel %vm297, %v294, 0
        %322 = vmatprep.subr.mxu0 0.0
        %323 = vmatpush1.msra.mxu0 %v295
        %324 = vmatprep.subr.mxu0 0.0
        %325 = vmatpush1.msra.mxu0 %v296
        %326 = vmatprep.subr.mxu0 0.0
        %327 = vmatpush1.msra.mxu0 0.0
        %328 = vmatprep.subr.mxu0 0.0
        %329 = vmatpush1.msra.mxu0 0.0
        %330 = vmatprep.subr.mxu0 0.0
        %331 = vmatpush1.msra.mxu0 0.0
        %332 = vmatprep.subr.mxu0 0.0
        %333 = vmatpush1.msra.mxu0 0.0
        %334 = vmatprep.subr.mxu0 0.0
        %335 = vmatpush1.msra.mxu0 0.0
        %336 = vmatprep.subr.mxu0 0.0
        %337 = vmatpush1.msra.mxu0 0.0
        %338 = vmatprep.subr.mxu0 0.0
        %339 = vmatpush1.msra.mxu0 0.0
        %340 = vmatprep.subr.mxu0 0.0
        %341 = vmatpush1.msra.mxu0 0.0
        %342 = vmatprep.subr.mxu0 0.0
        %343 = vmatpush1.msra.mxu0 0.0
        %344 = vmatprep.subr.mxu0 0.0
        %345 = vmatpush1.msra.mxu0 0.0
        %346 = vmatprep.subr.mxu0 0.0
        %347 = vmatpush1.msra.mxu0 0.0
        %348 = vmatprep.subr.mxu0 0.0
        %349 = vmatpush1.msra.mxu0 0.0
        %350 = vmatprep.subr.mxu0 0.0
        %351 = vmatpush1.msra.mxu0 0.0
        %352 = vmatprep.subr.mxu0 0.0
        %353 = vmatpush1.msra.mxu0 0.0
        %354 = vmatprep.subr.mxu0 0.0
        %355 = vmatpush1.msra.mxu0 0.0
        %356 = vmatprep.subr.mxu0 0.0
        %357 = vmatpush1.msra.mxu0 0.0
        %358 = vmatprep.subr.mxu0 0.0
        %359 = vmatpush1.msra.mxu0 0.0
        %360 = vmatprep.subr.mxu0 0.0
        %361 = vmatpush1.msra.mxu0 0.0
        %362 = vmatprep.subr.mxu0 0.0
        %363 = vmatpush1.msra.mxu0 0.0
        %364 = vmatprep.subr.mxu0 0.0
        %365 = vmatpush1.msra.mxu0 0.0
        %366 = vmatprep.subr.mxu0 0.0
        %367 = vmatpush1.msra.mxu0 0.0
        %368 = vmatprep.subr.mxu0 0.0
        %369 = vmatpush1.msra.mxu0 0.0
        %370 = vmatprep.subr.mxu0 0.0
        %371 = vmatpush1.msra.mxu0 0.0
        %372 = vmatprep.subr.mxu0 0.0
        %373 = vmatpush1.msra.mxu0 0.0
        %374 = vmatprep.subr.mxu0 0.0
        %375 = vmatpush1.msra.mxu0 0.0
        %376 = vmatprep.subr.mxu0 0.0
        %377 = vmatpush1.msra.mxu0 0.0
        %378 = vmatprep.subr.mxu0 0.0
        %379 = vmatpush1.msra.mxu0 0.0
        %380 = vmatprep.subr.mxu0 0.0
        %381 = vmatpush1.msra.mxu0 0.0
        %382 = vmatprep.subr.mxu0 0.0
        %383 = vmatpush1.msra.mxu0 0.0
        %384 = vmatprep.subr.mxu0 0.0
        %385 = vmatpush1.msra.mxu0 0.0
        %386 = vmatprep.mubr.f32.mxu0 0.0
        %387 = vmatmul.mubr.f32.gmra.mrb[0].mxu0 %v299
        %v388 = vpop.f32.mrb[0].mxu0
        %v389 = vadd.f32 0.0, %v388
        %v390 = vpop.f32.mrb[0].mxu0
        %391 = vmatprep.mubr.f32.mxu0 0.0
        %392 = vmatmul.mubr.f32.gmra.mrb[0].mxu0 %v302
        %v393 = vpop.f32.mrb[0].mxu0
        %v394 = vadd.f32 0.0, %v393
        %v395 = vpop.f32.mrb[0].mxu0
        %396 = vmatprep.mubr.f32.mxu0 0.0
        %397 = vmatmul.mubr.f32.gmra.mrb[0].mxu0 %v305
        %v398 = vpop.f32.mrb[0].mxu0
        %v399 = vadd.f32 0.0, %v398
        %v400 = vpop.f32.mrb[0].mxu0
        %401 = vmatprep.mubr.f32.mxu0 0.0
        %402 = vmatmul.mubr.f32.gmra.mrb[0].mxu0 %v308
        %v403 = vpop.f32.mrb[0].mxu0
        %v404 = vadd.f32 0.0, %v403
        %v405 = vpop.f32.mrb[0].mxu0
        %406 = vmatprep.mubr.f32.mxu0 0.0
        %407 = vmatmul.mubr.f32.gmra.mrb[0].mxu0 %v311
        %v408 = vpop.f32.mrb[0].mxu0
        %v409 = vadd.f32 0.0, %v408
        %v410 = vpop.f32.mrb[0].mxu0
        %411 = vmatprep.mubr.f32.mxu0 0.0
        %412 = vmatmul.mubr.f32.gmra.mrb[0].mxu0 %v314
        %v413 = vpop.f32.mrb[0].mxu0
        %v414 = vadd.f32 0.0, %v413
        %v415 = vpop.f32.mrb[0].mxu0
        %416 = vmatprep.mubr.f32.mxu0 0.0
        %417 = vmatmul.mubr.f32.gmra.mrb[0].mxu0 %v317
        %v418 = vpop.f32.mrb[0].mxu0
        %v419 = vadd.f32 0.0, %v418
        %v420 = vpop.f32.mrb[0].mxu0
        %421 = vmatprep.mubr.f32.mxu0 0.0
        %422 = vmatmul.mubr.f32.gmra.mrb[0].mxu0 %v320
        %v423 = vpop.f32.mrb[0].mxu0
        %v424 = vadd.f32 0.0, %v423
        %v425 = vpop.f32.mrb[0].mxu0
        %426 = vdwg.mxu0
        %427 = vxpose.xlu0.b32.start [1/16] %v389, 128
        %428 = vxpose.xlu0.b32.cont [2/16] %v394, 128
        %429 = vxpose.xlu0.b32.cont [3/16] 0.0, 128
        %430 = vxpose.xlu0.b32.cont [4/16] 0.0, 128
        %431 = vxpose.xlu0.b32.cont [5/16] 0.0, 128
        %432 = vxpose.xlu0.b32.cont [6/16] 0.0, 128
        %433 = vxpose.xlu0.b32.cont [7/16] 0.0, 128
        %434 = vxpose.xlu0.b32.cont [8/16] 0.0, 128
        %435 = vxpose.xlu0.b32.cont [9/16] 0.0, 128
        %436 = vxpose.xlu0.b32.cont [10/16] 0.0, 128
        %437 = vxpose.xlu0.b32.cont [11/16] 0.0, 128
        %438 = vxpose.xlu0.b32.cont [12/16] 0.0, 128
        %439 = vxpose.xlu0.b32.cont [13/16] 0.0, 128
        %440 = vxpose.xlu0.b32.cont [14/16] 0.0, 128
        %441 = vxpose.xlu0.b32.cont [15/16] 0.0, 128
        %442 = vxpose.xlu0.b32.end [16/16] 0.0, 128
        %v443 = vpop.trf.xlu0
        %v444 = vpop.trf.xlu0
        %v445 = vpop.trf.xlu0
        %v446 = vpop.trf.xlu0
        %v447 = vpop.trf.xlu0
        %v448 = vpop.trf.xlu0
        %v449 = vpop.trf.xlu0
        %v450 = vpop.trf.xlu0
        %v451 = vpop.trf.xlu0
        %v452 = vpop.trf.xlu0
        %v453 = vpop.trf.xlu0
        %v454 = vpop.trf.xlu0
        %v455 = vpop.trf.xlu0
        %v456 = vpop.trf.xlu0
        %v457 = vpop.trf.xlu0
        %v458 = vpop.trf.xlu0
        %459 = vxpose.xlu0.b32.start [1/16] %v399, 128
        %460 = vxpose.xlu0.b32.cont [2/16] %v404, 128
        %461 = vxpose.xlu0.b32.cont [3/16] 0.0, 128
        %462 = vxpose.xlu0.b32.cont [4/16] 0.0, 128
        %463 = vxpose.xlu0.b32.cont [5/16] 0.0, 128
        %464 = vxpose.xlu0.b32.cont [6/16] 0.0, 128
        %465 = vxpose.xlu0.b32.cont [7/16] 0.0, 128
        %466 = vxpose.xlu0.b32.cont [8/16] 0.0, 128
        %467 = vxpose.xlu0.b32.cont [9/16] 0.0, 128
        %468 = vxpose.xlu0.b32.cont [10/16] 0.0, 128
        %469 = vxpose.xlu0.b32.cont [11/16] 0.0, 128
        %470 = vxpose.xlu0.b32.cont [12/16] 0.0, 128
        %471 = vxpose.xlu0.b32.cont [13/16] 0.0, 128
        %472 = vxpose.xlu0.b32.cont [14/16] 0.0, 128
        %473 = vxpose.xlu0.b32.cont [15/16] 0.0, 128
        %474 = vxpose.xlu0.b32.end [16/16] 0.0, 128
        %v475 = vpop.trf.xlu0
        %v476 = vpop.trf.xlu0
        %v477 = vpop.trf.xlu0
        %v478 = vpop.trf.xlu0
        %v479 = vpop.trf.xlu0
        %v480 = vpop.trf.xlu0
        %v481 = vpop.trf.xlu0
        %v482 = vpop.trf.xlu0
        %v483 = vpop.trf.xlu0
        %v484 = vpop.trf.xlu0
        %v485 = vpop.trf.xlu0
        %v486 = vpop.trf.xlu0
        %v487 = vpop.trf.xlu0
        %v488 = vpop.trf.xlu0
        %v489 = vpop.trf.xlu0
        %v490 = vpop.trf.xlu0
        %491 = vxpose.xlu0.b32.start [1/16] %v409, 128
        %492 = vxpose.xlu0.b32.cont [2/16] %v414, 128
        %493 = vxpose.xlu0.b32.cont [3/16] 0.0, 128
        %494 = vxpose.xlu0.b32.cont [4/16] 0.0, 128
        %495 = vxpose.xlu0.b32.cont [5/16] 0.0, 128
        %496 = vxpose.xlu0.b32.cont [6/16] 0.0, 128
        %497 = vxpose.xlu0.b32.cont [7/16] 0.0, 128
        %498 = vxpose.xlu0.b32.cont [8/16] 0.0, 128
        %499 = vxpose.xlu0.b32.cont [9/16] 0.0, 128
        %500 = vxpose.xlu0.b32.cont [10/16] 0.0, 128
        %501 = vxpose.xlu0.b32.cont [11/16] 0.0, 128
        %502 = vxpose.xlu0.b32.cont [12/16] 0.0, 128
        %503 = vxpose.xlu0.b32.cont [13/16] 0.0, 128
        %504 = vxpose.xlu0.b32.cont [14/16] 0.0, 128
        %505 = vxpose.xlu0.b32.cont [15/16] 0.0, 128
        %506 = vxpose.xlu0.b32.end [16/16] 0.0, 128
        %v507 = vpop.trf.xlu0
        %v508 = vpop.trf.xlu0
        %v509 = vpop.trf.xlu0
        %v510 = vpop.trf.xlu0
        %v511 = vpop.trf.xlu0
        %v512 = vpop.trf.xlu0
        %v513 = vpop.trf.xlu0
        %v514 = vpop.trf.xlu0
        %v515 = vpop.trf.xlu0
        %v516 = vpop.trf.xlu0
        %v517 = vpop.trf.xlu0
        %v518 = vpop.trf.xlu0
        %v519 = vpop.trf.xlu0
        %v520 = vpop.trf.xlu0
        %v521 = vpop.trf.xlu0
        %v522 = vpop.trf.xlu0
        %523 = vxpose.xlu0.b32.start [1/16] %v419, 128
        %524 = vxpose.xlu0.b32.cont [2/16] %v424, 128
        %525 = vxpose.xlu0.b32.cont [3/16] 0.0, 128
        %526 = vxpose.xlu0.b32.cont [4/16] 0.0, 128
        %527 = vxpose.xlu0.b32.cont [5/16] 0.0, 128
        %528 = vxpose.xlu0.b32.cont [6/16] 0.0, 128
        %529 = vxpose.xlu0.b32.cont [7/16] 0.0, 128
        %530 = vxpose.xlu0.b32.cont [8/16] 0.0, 128
        %531 = vxpose.xlu0.b32.cont [9/16] 0.0, 128
        %532 = vxpose.xlu0.b32.cont [10/16] 0.0, 128
        %533 = vxpose.xlu0.b32.cont [11/16] 0.0, 128
        %534 = vxpose.xlu0.b32.cont [12/16] 0.0, 128
        %535 = vxpose.xlu0.b32.cont [13/16] 0.0, 128
        %536 = vxpose.xlu0.b32.cont [14/16] 0.0, 128
        %537 = vxpose.xlu0.b32.cont [15/16] 0.0, 128
        %538 = vxpose.xlu0.b32.end [16/16] 0.0, 128
        %v539 = vpop.trf.xlu0
        %v540 = vpop.trf.xlu0
        %v541 = vpop.trf.xlu0
        %v542 = vpop.trf.xlu0
        %v543 = vpop.trf.xlu0
        %v544 = vpop.trf.xlu0
        %v545 = vpop.trf.xlu0
        %v546 = vpop.trf.xlu0
        %v547 = vpop.trf.xlu0
        %v548 = vpop.trf.xlu0
        %v549 = vpop.trf.xlu0
        %v550 = vpop.trf.xlu0
        %v551 = vpop.trf.xlu0
        %v552 = vpop.trf.xlu0
        %v553 = vpop.trf.xlu0
        %v554 = vpop.trf.xlu0
        %v555 = vld [vmem:[%s234] sm:$0xff]
        %v556 = vld [vmem:[%s234 + $0x8] sm:$0xff]
        %v558 = vsel %vm297, %v443, 0
        %v561 = vsel %vm297, %v444, 0
        %v564 = vsel %vm297, %v475, 0
        %v567 = vsel %vm297, %v476, 0
        %v570 = vsel %vm297, %v507, 0
        %v573 = vsel %vm297, %v508, 0
        %v576 = vsel %vm297, %v539, 0
        %v579 = vsel %vm297, %v540, 0
        %581 = vmatprep.subr.mxu0 0.0
        %582 = vmatpush1.msra.mxu0 %v555
        %583 = vmatprep.subr.mxu0 0.0
        %584 = vmatpush1.msra.mxu0 %v556
        %585 = vmatprep.subr.mxu0 0.0
        %586 = vmatpush1.msra.mxu0 0.0
        %587 = vmatprep.subr.mxu0 0.0
        %588 = vmatpush1.msra.mxu0 0.0
        %589 = vmatprep.subr.mxu0 0.0
        %590 = vmatpush1.msra.mxu0 0.0
        %591 = vmatprep.subr.mxu0 0.0
        %592 = vmatpush1.msra.mxu0 0.0
        %593 = vmatprep.subr.mxu0 0.0
        %594 = vmatpush1.msra.mxu0 0.0
        %595 = vmatprep.subr.mxu0 0.0
        %596 = vmatpush1.msra.mxu0 0.0
        %597 = vmatprep.subr.mxu0 0.0
        %598 = vmatpush1.msra.mxu0 0.0
        %599 = vmatprep.subr.mxu0 0.0
        %600 = vmatpush1.msra.mxu0 0.0
        %601 = vmatprep.subr.mxu0 0.0
        %602 = vmatpush1.msra.mxu0 0.0
        %603 = vmatprep.subr.mxu0 0.0
        %604 = vmatpush1.msra.mxu0 0.0
        %605 = vmatprep.subr.mxu0 0.0
        %606 = vmatpush1.msra.mxu0 0.0
        %607 = vmatprep.subr.mxu0 0.0
        %608 = vmatpush1.msra.mxu0 0.0
        %609 = vmatprep.subr.mxu0 0.0
        %610 = vmatpush1.msra.mxu0 0.0
        %611 = vmatprep.subr.mxu0 0.0
        %612 = vmatpush1.msra.mxu0 0.0
        %613 = vmatprep.subr.mxu0 0.0
        %614 = vmatpush1.msra.mxu0 0.0
        %615 = vmatprep.subr.mxu0 0.0
        %616 = vmatpush1.msra.mxu0 0.0
        %617 = vmatprep.subr.mxu0 0.0
        %618 = vmatpush1.msra.mxu0 0.0
        %619 = vmatprep.subr.mxu0 0.0
        %620 = vmatpush1.msra.mxu0 0.0
        %621 = vmatprep.subr.mxu0 0.0
        %622 = vmatpush1.msra.mxu0 0.0
        %623 = vmatprep.subr.mxu0 0.0
        %624 = vmatpush1.msra.mxu0 0.0
        %625 = vmatprep.subr.mxu0 0.0
        %626 = vmatpush1.msra.mxu0 0.0
        %627 = vmatprep.subr.mxu0 0.0
        %628 = vmatpush1.msra.mxu0 0.0
        %629 = vmatprep.subr.mxu0 0.0
        %630 = vmatpush1.msra.mxu0 0.0
        %631 = vmatprep.subr.mxu0 0.0
        %632 = vmatpush1.msra.mxu0 0.0
        %633 = vmatprep.subr.mxu0 0.0
        %634 = vmatpush1.msra.mxu0 0.0
        %635 = vmatprep.subr.mxu0 0.0
        %636 = vmatpush1.msra.mxu0 0.0
        %637 = vmatprep.subr.mxu0 0.0
        %638 = vmatpush1.msra.mxu0 0.0
        %639 = vmatprep.subr.mxu0 0.0
        %640 = vmatpush1.msra.mxu0 0.0
        %641 = vmatprep.subr.mxu0 0.0
        %642 = vmatpush1.msra.mxu0 0.0
        %643 = vmatprep.subr.mxu0 0.0
        %644 = vmatpush1.msra.mxu0 0.0
        %645 = vmatprep.mubr.f32.mxu0 0.0
        %646 = vmatmul.mubr.f32.gmra.mrb[0].mxu0 %v558
        %v647 = vpop.f32.mrb[0].mxu0
        %v648 = vadd.f32 0.0, %v647
        %v649 = vpop.f32.mrb[0].mxu0
        %650 = vmatprep.mubr.f32.mxu0 0.0
        %651 = vmatmul.mubr.f32.gmra.mrb[0].mxu0 %v561
        %v652 = vpop.f32.mrb[0].mxu0
        %v653 = vadd.f32 0.0, %v652
        %v654 = vpop.f32.mrb[0].mxu0
        %655 = vmatprep.mubr.f32.mxu0 0.0
        %656 = vmatmul.mubr.f32.gmra.mrb[0].mxu0 %v564
        %v657 = vpop.f32.mrb[0].mxu0
        %v658 = vadd.f32 0.0, %v657
        %v659 = vpop.f32.mrb[0].mxu0
        %660 = vmatprep.mubr.f32.mxu0 0.0
        %661 = vmatmul.mubr.f32.gmra.mrb[0].mxu0 %v567
        %v662 = vpop.f32.mrb[0].mxu0
        %v663 = vadd.f32 0.0, %v662
        %v664 = vpop.f32.mrb[0].mxu0
        %665 = vmatprep.mubr.f32.mxu0 0.0
        %666 = vmatmul.mubr.f32.gmra.mrb[0].mxu0 %v570
        %v667 = vpop.f32.mrb[0].mxu0
        %v668 = vadd.f32 0.0, %v667
        %v669 = vpop.f32.mrb[0].mxu0
        %670 = vmatprep.mubr.f32.mxu0 0.0
        %671 = vmatmul.mubr.f32.gmra.mrb[0].mxu0 %v573
        %v672 = vpop.f32.mrb[0].mxu0
        %v673 = vadd.f32 0.0, %v672
        %v674 = vpop.f32.mrb[0].mxu0
        %675 = vmatprep.mubr.f32.mxu0 0.0
        %676 = vmatmul.mubr.f32.gmra.mrb[0].mxu0 %v576
        %v677 = vpop.f32.mrb[0].mxu0
        %v678 = vadd.f32 0.0, %v677
        %v679 = vpop.f32.mrb[0].mxu0
        %680 = vmatprep.mubr.f32.mxu0 0.0
        %681 = vmatmul.mubr.f32.gmra.mrb[0].mxu0 %v579
        %v682 = vpop.f32.mrb[0].mxu0
        %v683 = vadd.f32 0.0, %v682
        %v684 = vpop.f32.mrb[0].mxu0
        %685 = vdwg.mxu0
        %686 = vxpose.xlu0.b32.start [1/16] %v648, 128
        %687 = vxpose.xlu0.b32.cont [2/16] %v653, 128
        %688 = vxpose.xlu0.b32.cont [3/16] 0.0, 128
        %689 = vxpose.xlu0.b32.cont [4/16] 0.0, 128
        %690 = vxpose.xlu0.b32.cont [5/16] 0.0, 128
        %691 = vxpose.xlu0.b32.cont [6/16] 0.0, 128
        %692 = vxpose.xlu0.b32.cont [7/16] 0.0, 128
        %693 = vxpose.xlu0.b32.cont [8/16] 0.0, 128
        %694 = vxpose.xlu0.b32.cont [9/16] 0.0, 128
        %695 = vxpose.xlu0.b32.cont [10/16] 0.0, 128
        %696 = vxpose.xlu0.b32.cont [11/16] 0.0, 128
        %697 = vxpose.xlu0.b32.cont [12/16] 0.0, 128
        %698 = vxpose.xlu0.b32.cont [13/16] 0.0, 128
        %699 = vxpose.xlu0.b32.cont [14/16] 0.0, 128
        %700 = vxpose.xlu0.b32.cont [15/16] 0.0, 128
        %701 = vxpose.xlu0.b32.end [16/16] 0.0, 128
        %v702 = vpop.trf.xlu0
        %v703 = vpop.trf.xlu0
        %v704 = vpop.trf.xlu0
        %v705 = vpop.trf.xlu0
        %v706 = vpop.trf.xlu0
        %v707 = vpop.trf.xlu0
        %v708 = vpop.trf.xlu0
        %v709 = vpop.trf.xlu0
        %v710 = vpop.trf.xlu0
        %v711 = vpop.trf.xlu0
        %v712 = vpop.trf.xlu0
        %v713 = vpop.trf.xlu0
        %v714 = vpop.trf.xlu0
        %v715 = vpop.trf.xlu0
        %v716 = vpop.trf.xlu0
        %v717 = vpop.trf.xlu0
        %718 = vxpose.xlu0.b32.start [1/16] %v658, 128
        %719 = vxpose.xlu0.b32.cont [2/16] %v663, 128
        %720 = vxpose.xlu0.b32.cont [3/16] 0.0, 128
        %721 = vxpose.xlu0.b32.cont [4/16] 0.0, 128
        %722 = vxpose.xlu0.b32.cont [5/16] 0.0, 128
        %723 = vxpose.xlu0.b32.cont [6/16] 0.0, 128
        %724 = vxpose.xlu0.b32.cont [7/16] 0.0, 128
        %725 = vxpose.xlu0.b32.cont [8/16] 0.0, 128
        %726 = vxpose.xlu0.b32.cont [9/16] 0.0, 128
        %727 = vxpose.xlu0.b32.cont [10/16] 0.0, 128
        %728 = vxpose.xlu0.b32.cont [11/16] 0.0, 128
        %729 = vxpose.xlu0.b32.cont [12/16] 0.0, 128
        %730 = vxpose.xlu0.b32.cont [13/16] 0.0, 128
        %731 = vxpose.xlu0.b32.cont [14/16] 0.0, 128
        %732 = vxpose.xlu0.b32.cont [15/16] 0.0, 128
        %733 = vxpose.xlu0.b32.end [16/16] 0.0, 128
        %v734 = vpop.trf.xlu0
        %v735 = vpop.trf.xlu0
        %v736 = vpop.trf.xlu0
        %v737 = vpop.trf.xlu0
        %v738 = vpop.trf.xlu0
        %v739 = vpop.trf.xlu0
        %v740 = vpop.trf.xlu0
        %v741 = vpop.trf.xlu0
        %v742 = vpop.trf.xlu0
        %v743 = vpop.trf.xlu0
        %v744 = vpop.trf.xlu0
        %v745 = vpop.trf.xlu0
        %v746 = vpop.trf.xlu0
        %v747 = vpop.trf.xlu0
        %v748 = vpop.trf.xlu0
        %v749 = vpop.trf.xlu0
        %750 = vxpose.xlu0.b32.start [1/16] %v668, 128
        %751 = vxpose.xlu0.b32.cont [2/16] %v673, 128
        %752 = vxpose.xlu0.b32.cont [3/16] 0.0, 128
        %753 = vxpose.xlu0.b32.cont [4/16] 0.0, 128
        %754 = vxpose.xlu0.b32.cont [5/16] 0.0, 128
        %755 = vxpose.xlu0.b32.cont [6/16] 0.0, 128
        %756 = vxpose.xlu0.b32.cont [7/16] 0.0, 128
        %757 = vxpose.xlu0.b32.cont [8/16] 0.0, 128
        %758 = vxpose.xlu0.b32.cont [9/16] 0.0, 128
        %759 = vxpose.xlu0.b32.cont [10/16] 0.0, 128
        %760 = vxpose.xlu0.b32.cont [11/16] 0.0, 128
        %761 = vxpose.xlu0.b32.cont [12/16] 0.0, 128
        %762 = vxpose.xlu0.b32.cont [13/16] 0.0, 128
        %763 = vxpose.xlu0.b32.cont [14/16] 0.0, 128
        %764 = vxpose.xlu0.b32.cont [15/16] 0.0, 128
        %765 = vxpose.xlu0.b32.end [16/16] 0.0, 128
        %v766 = vpop.trf.xlu0
        %v767 = vpop.trf.xlu0
        %v768 = vpop.trf.xlu0
        %v769 = vpop.trf.xlu0
        %v770 = vpop.trf.xlu0
        %v771 = vpop.trf.xlu0
        %v772 = vpop.trf.xlu0
        %v773 = vpop.trf.xlu0
        %v774 = vpop.trf.xlu0
        %v775 = vpop.trf.xlu0
        %v776 = vpop.trf.xlu0
        %v777 = vpop.trf.xlu0
        %v778 = vpop.trf.xlu0
        %v779 = vpop.trf.xlu0
        %v780 = vpop.trf.xlu0
        %v781 = vpop.trf.xlu0
        %782 = vxpose.xlu0.b32.start [1/16] %v678, 128
        %783 = vxpose.xlu0.b32.cont [2/16] %v683, 128
        %784 = vxpose.xlu0.b32.cont [3/16] 0.0, 128
        %785 = vxpose.xlu0.b32.cont [4/16] 0.0, 128
        %786 = vxpose.xlu0.b32.cont [5/16] 0.0, 128
        %787 = vxpose.xlu0.b32.cont [6/16] 0.0, 128
        %788 = vxpose.xlu0.b32.cont [7/16] 0.0, 128
        %789 = vxpose.xlu0.b32.cont [8/16] 0.0, 128
        %790 = vxpose.xlu0.b32.cont [9/16] 0.0, 128
        %791 = vxpose.xlu0.b32.cont [10/16] 0.0, 128
        %792 = vxpose.xlu0.b32.cont [11/16] 0.0, 128
        %793 = vxpose.xlu0.b32.cont [12/16] 0.0, 128
        %794 = vxpose.xlu0.b32.cont [13/16] 0.0, 128
        %795 = vxpose.xlu0.b32.cont [14/16] 0.0, 128
        %796 = vxpose.xlu0.b32.cont [15/16] 0.0, 128
        %797 = vxpose.xlu0.b32.end [16/16] 0.0, 128
        %v798 = vpop.trf.xlu0
        %v799 = vpop.trf.xlu0
        %v800 = vpop.trf.xlu0
        %v801 = vpop.trf.xlu0
        %v802 = vpop.trf.xlu0
        %v803 = vpop.trf.xlu0
        %v804 = vpop.trf.xlu0
        %v805 = vpop.trf.xlu0
        %v806 = vpop.trf.xlu0
        %v807 = vpop.trf.xlu0
        %v808 = vpop.trf.xlu0
        %v809 = vpop.trf.xlu0
        %v810 = vpop.trf.xlu0
        %v811 = vpop.trf.xlu0
        %v812 = vpop.trf.xlu0
        %v813 = vpop.trf.xlu0
        %814 = vst.msk [vmem:[%s284] sm:$0xff] %vm297, %v702
        %815 = vst.msk [vmem:[%s284 + $0x8] sm:$0xff] %vm297, %v703
        %816 = vst.msk [vmem:[%s284 + $0x10] sm:$0xff] %vm297, %v734
        %817 = vst.msk [vmem:[%s284 + $0x18] sm:$0xff] %vm297, %v735
        %818 = vst.msk [vmem:[%s284 + $0x20] sm:$0xff] %vm297, %v766
        %819 = vst.msk [vmem:[%s284 + $0x28] sm:$0xff] %vm297, %v767
        %820 = vst.msk [vmem:[%s284 + $0x30] sm:$0xff] %vm297, %v798
        %821 = vst.msk [vmem:[%s284 + $0x38] sm:$0xff] %vm297, %v799
        %s822 = sand.u32 %s125, 1
        %s823 = scalar_lea.sflag [#allocation4], %s822
        %s824 = sand.u32 %s125, 1
        %s825 = smul.addr %s824, 64
        %s826 = scalar_lea.vmem [#allocation8], %s825
        // Predicated region
        $region45: #{tpu_custom_call.1} parent=31 // pred_check
          %p827 = pneg %p135
        $region46: #{tpu_custom_call.1} parent=31 // pred_check_branch
          %829 = sbr.rel (%p827) target = $region48
        $region47: #{tpu_custom_call.1} parent=31 // pred_region
          %s830 = smul.u32 4, %s28
          %s832 = ssub.s32 1024, 1024
          %833 = vsyncadd %s823, %s832
          %s834 = smul.addr %s830, 2
          %s835 = smul.addr %s27, 8
          %s836 = sadd.s32 %s834, %s835
          %s837 = smul.addr %s836, 128
          %s838 = scalar_lea.hbm %s3, %s837
          %s839 = sshll.u32 %s826, 4
          %s840 = int_to_ptr.vmem [resolvable:$true] %s839
          %845 = dma.vmem_to_hbm [thread:$0]  %s840, 1024, %s838, %s823, 128, 128, 8
        $region48: #{tpu_custom_call.1} parent=31 // pred_fallthru
          _
      $region32: #{tpu_custom_call.1} parent=5 // pred_fallthru
        _
      %p846 = scmp.le.s32.totalorder 2, %s18
      // Predicated region
      $region49: #{tpu_custom_call.1} parent=5 // pred_check
        %p847 = pneg %p846
      $region50: #{tpu_custom_call.1} parent=5 // pred_check_branch
        %849 = sbr.rel (%p847) target = $region52
      $region51: #{tpu_custom_call.1} parent=5 // pred_region
        %s850 = ssub.s32 %s18, 2
        // Predicated region
        $region53: #{tpu_custom_call.1} parent=51 // pred_check
          %p851 = pneg %p141
        $region54: #{tpu_custom_call.1} parent=51 // pred_check_branch
          %853 = sbr.rel (%p851) target = $region56
        $region55: #{tpu_custom_call.1} parent=51 // pred_region
          %s854 = sand.u32 %s126, 1
          %s855 = scalar_lea.sflag [#allocation4], %s854
          %s856 = sand.u32 %s126, 1
          %s857 = smul.addr %s856, 64
          %s858 = scalar_lea.vmem [#allocation8], %s857
          %859 = dma.done %s855, 1024
        $region56: #{tpu_custom_call.1} parent=51 // pred_fallthru
          _
      $region52: #{tpu_custom_call.1} parent=5 // pred_fallthru
        _
    $region6: #{tpu_custom_call.1} parent=1 // loop_footer
      %s22 = sadd.s32 1, %s18
    $region7: #{tpu_custom_call.1} parent=1 // loop_footer_branch
      %17 = sbr.rel target = $region3
    $region8: #{tpu_custom_call.1} parent=1 // loop_exit
      _
    %860 = vsyncpa [#allocation3], 1
    %s861 = scalar_lea.sflag [#allocation3], 1
    %862 = vsyncpa %s861, 1
    %863 = vsyncpa [#allocation6], 1
    %s864 = scalar_lea.sflag [#allocation6], 1
    %865 = vsyncpa %s864, 1
    %866 = vsyncpa [#allocation4], 1
    %s867 = scalar_lea.sflag [#allocation4], 1
    %868 = vsyncpa %s867, 1

</llo_original>
